<compile_context>
chip_gen: v5e
topology: v5e:2x2
jax: 0.10.0
libtpu: 0.0.40
codegen_flags: <defaults>
</compile_context>

<pallas_src>
import jax
import jax.numpy as jnp
from jax import lax
from jax.experimental import pallas as pl
from jax.experimental.pallas import tpu as pltpu


_DEFAULT_VMEM_BYTES = 64 * 1024 * 1024        # conservative default (v7x per-core VMEM)


def _vmem_limit_and_block_budget():
    """Derive (vmem_limit_bytes, per-block byte budget) from the chip's VMEM size."""
    try:
        cap = int(getattr(pltpu.get_tpu_info(), "vmem_capacity_bytes", 0)) or _DEFAULT_VMEM_BYTES
    except Exception:
        cap = _DEFAULT_VMEM_BYTES
    vmem_limit = (3 * cap) // 4               # ~96 MiB on v5e/v6e, ~48 MiB on v7x
    # Footprint ~= 2*(in block + out block) (double buffering) + tiny partial buffers.
    # vmem_limit // 12 keeps that comfortably under the limit on every generation
    # (~8 MiB blocks on v5e/v6e, ~4 MiB on v7x, per the review's guidance).
    block_budget = min(8 * 1024 * 1024, vmem_limit // 12)
    return vmem_limit, block_budget


def _minibatch_std(x):
    """x: (N, C, H, W) -> (N, C+1, H, W); extra channel = unbiased std over all of x."""
    n, c, h, w = x.shape
    l = h * w

    # Lane-dense view: full 128-lane rows whenever possible (contiguous reshape: free).
    if l % 128 == 0:
        r, lanes = l // 128, 128
    else:
        # TODO(synk): lane-sparse fallback (H*W % 128 != 0) uses full (1, H*W) rows; packing
        # channels into the sublane axis or padding H*W to a 128 multiple (masked tail)
        # would keep stores lane-dense for shapes like 7x7 / 14x14.
        r, lanes = 1, l
    xv = x.reshape(n, c, r, lanes)

    vmem_limit, block_budget = _vmem_limit_and_block_budget()
    itemsize = jnp.dtype(x.dtype).itemsize
    plane_bytes = r * lanes * itemsize        # one (n, c) spatial plane
    max_planes = max(1, block_budget // plane_bytes)
    # No divisibility constraints: bc need not divide C, bn need not equal N.
    bc = min(c, max_planes)                   # channels first (contiguous in HBM)
    bn = min(n, max(1, max_planes // bc))
    nb = (n + bn - 1) // bn
    cb = (c + bc - 1) // bc
    needs_mask = (n % bn != 0) or (c % bc != 0)   # padded edge blocks need masking

    # Per-step partials folded to (8, lanes) f32 when possible (leading-dim split of the
    # sublane axis is layout-preserving), else (r, lanes).
    split_r = (r % 8 == 0) and (r > 8)
    acc_r = 8 if r % 8 == 0 else r

    n_elems = float(n) * float(c) * float(l)

    # ------------- Pass 1: fused streaming copy + partial reduction ----------------
    def copy_reduce_kernel(x_ref, y_ref, psum_ref, psq_ref):
        xb = x_ref[...]                       # (bn, bc, r, lanes), native dtype
        y_ref[...] = xb                       # direct store into out[:, :C], no concat temp
        xf = xb.astype(jnp.float32)           # f32 only on the reduction path
        if needs_mask:
            i = pl.program_id(0)
            j = pl.program_id(1)
            n_ids = lax.broadcasted_iota(jnp.int32, xf.shape, 0) + i * bn
            c_ids = lax.broadcasted_iota(jnp.int32, xf.shape, 1) + j * bc
            xf = jnp.where((n_ids < n) & (c_ids < c), xf, 0.0)   # drop padded rows/channels
        if split_r:
            xf = xf.reshape(bn, bc, r // 8, 8, lanes)            # leading-dim split: free
            axes = (0, 1, 2)
        else:
            axes = (0, 1)
        # Leading (non-tiled) dim reductions: VPU vreg adds only, no per-step XLU work.
        psum_ref[...] = jnp.sum(xf, axis=axes).reshape(psum_ref.shape)
        psq_ref[...] = jnp.sum(xf * xf, axis=axes).reshape(psq_ref.shape)

    out_struct = jax.ShapeDtypeStruct((n, c + 1, r, lanes), x.dtype)
    part_struct = jax.ShapeDtypeStruct((nb, cb, acc_r, lanes), jnp.float32)

    y, psum, psq = pl.pallas_call(
        copy_reduce_kernel,
        out_shape=(out_struct, part_struct, part_struct),
        grid_spec=pltpu.PrefetchScalarGridSpec(
            num_scalar_prefetch=0,
            grid=(nb, cb),
            in_specs=[
                pl.BlockSpec((bn, bc, r, lanes), lambda i, j: (i, j, 0, 0)),
            ],
            out_specs=(
                pl.BlockSpec((bn, bc, r, lanes), lambda i, j: (i, j, 0, 0)),
                pl.BlockSpec((1, 1, acc_r, lanes), lambda i, j: (i, j, 0, 0)),
                pl.BlockSpec((1, 1, acc_r, lanes), lambda i, j: (i, j, 0, 0)),
            ),
        ),
        compiler_params=pltpu.CompilerParams(
            # No carried state -> fully parallel; v7x megacore splits the HBM-bound
            # stream across both TensorCores (harmless on single-core v5e/v6e).
            dimension_semantics=("parallel", "parallel"),
            vmem_limit_bytes=vmem_limit,
        ),
    )(xv)

    # ------------- Tiny epilogue: combine partials -> unbiased std -----------------
    total = jnp.sum(psum)
    total_sq = jnp.sum(psq)
    mean = total / n_elems
    # NOTE: single-pass E[x^2] - mean^2 in f32; fine for roughly zero-mean activations,
    # loses precision when |mean| >> std (a shifted/Welford combine would fix that).
    var = (total_sq - n_elems * mean * mean) / (n_elems - 1.0)
    std = jnp.sqrt(jnp.maximum(var, 0.0)).reshape(1, 1).astype(jnp.float32)

    # ------------- Pass 2: write the std channel in place (aliased buffer) ---------
    bn2 = min(n, max(1, (2 * 1024 * 1024) // plane_bytes))
    nb2 = (n + bn2 - 1) // bn2

    def std_write_kernel(std_ref, y_hbm_ref, o_ref):
        del y_hbm_ref                          # aliased output; x data is already in place
        o_ref[...] = jnp.broadcast_to(std_ref[...], o_ref.shape).astype(o_ref.dtype)

    out = pl.pallas_call(
        std_write_kernel,
        out_shape=out_struct,
        grid_spec=pltpu.PrefetchScalarGridSpec(
            num_scalar_prefetch=0,
            grid=(nb2,),
            in_specs=[
                pl.BlockSpec((1, 1), lambda i: (0, 0)),   # std scalar
                pl.BlockSpec(memory_space=pl.ANY),        # big buffer: aliased, no auto-DMA
            ],
            # Channel block of size 1 at block index C == element offset C: writes only
            # the valid std channel (no dead-channel broadcast / fully masked writeback).
            out_specs=pl.BlockSpec((bn2, 1, r, lanes), lambda i: (i, c, 0, 0)),
        ),
        input_output_aliases={1: 0},           # fill the extra channel of the pass-1 buffer
        compiler_params=pltpu.CompilerParams(
            dimension_semantics=("arbitrary",),
            vmem_limit_bytes=vmem_limit,
        ),
    )(std, y)

    return out.reshape(n, c + 1, h, w)         # contiguous reshape: free


minibatch_std = jax.jit(_minibatch_std)


def _reference(x):
    # Pure-JAX reference mirroring torch.std (unbiased) + expand + cat.
    std = jnp.std(x.astype(jnp.float32), ddof=1).astype(x.dtype)
    n, _, h, w = x.shape
    return jnp.concatenate([x, jnp.broadcast_to(std, (n, 1, h, w))], axis=1)


if __name__ == "__main__":
    key = jax.random.PRNGKey(0)
    x = jax.random.normal(key, (2, 4, 16, 16), dtype=jnp.float32)

    out = minibatch_std(x)
    out = jax.block_until_ready(out)

    ref = _reference(x)
    assert out.shape == (2, 5, 16, 16), out.shape
    assert jnp.allclose(out, ref, atol=1e-5, rtol=1e-5), "mismatch vs reference"

    print("KERNEL_OK")
</pallas_src>

<mosaic_0001>
module attributes {stable_mosaic.version = 11 : i64} {
  func.func @std_write_kernel(%arg0: i32, %arg1: memref<1x1xf32, #tpu.memory_space<vmem>>, %arg2: memref<2x5x2x128xf32, #tpu.memory_space<any>>, %arg3: memref<2x1x2x128xf32, #tpu.memory_space<vmem>>) attributes {dimension_semantics = [#tpu.dimension_semantics<arbitrary>], iteration_bounds = array<i64: 1>, scalar_prefetch = 0 : i64, scratch_operands = 0 : i64, tpu.core_type = #tpu.core_type<tc>, window_params = [{pipeline_mode = #tpu.pipeline_mode<synchronous>, transform_indices = @transform_0, window_bounds = array<i64: 1, 1>}, {}, {transform_indices = @transform_2, window_bounds = array<i64: 2, 1, 2, 128>}]} {
    %c0 = arith.constant 0 : index
    %c0_0 = arith.constant 0 : index
    %0 = vector.load %arg1[%c0, %c0_0] : memref<1x1xf32, #tpu.memory_space<vmem>>, vector<1x1xf32>
    %1 = vector.shape_cast %0 : vector<1x1xf32> to vector<1x1x1x1xf32>
    %2 = vector.broadcast %1 : vector<1x1x1x1xf32> to vector<2x1x2x128xf32>
    %c0_1 = arith.constant 0 : index
    %c0_2 = arith.constant 0 : index
    %c0_3 = arith.constant 0 : index
    %c0_4 = arith.constant 0 : index
    %3 = vector.load %arg3[%c0_1, %c0_2, %c0_3, %c0_4] : memref<2x1x2x128xf32, #tpu.memory_space<vmem>>, vector<2x1x2x128xf32>
    tpu.vector_store %arg3[%c0_1, %c0_2, %c0_3, %c0_4], %2 {strides = array<i32>} : memref<2x1x2x128xf32, #tpu.memory_space<vmem>>, vector<2x1x2x128xf32>,
    return
  }
  func.func @transform_0(%arg0: i32) -> (i32, i32) {
    %c0_i32 = arith.constant 0 : i32
    %c0_i32_0 = arith.constant 0 : i32
    %c0_i32_1 = arith.constant 0 : i32
    return %c0_i32, %c0_i32_0 : i32, i32
  }
  func.func @transform_2(%arg0: i32) -> (i32, i32, i32, i32) {
    %c4_i32 = arith.constant 4 : i32
    %c0_i32 = arith.constant 0 : i32
    %c0_i32_0 = arith.constant 0 : i32
    %c0_i32_1 = arith.constant 0 : i32
    return %arg0, %c4_i32, %c0_i32, %c0_i32_0 : i32, i32, i32, i32
  }
}

module attributes {stable_mosaic.version = 11 : i64} {
  func.func @copy_reduce_kernel(%arg0: i32, %arg1: i32, %arg2: memref<2x4x2x128xf32, #tpu.memory_space<vmem>>, %arg3: memref<2x4x2x128xf32, #tpu.memory_space<vmem>>, %arg4: memref<1x1x2x128xf32, #tpu.memory_space<vmem>>, %arg5: memref<1x1x2x128xf32, #tpu.memory_space<vmem>>) attributes {dimension_semantics = [#tpu.dimension_semantics<parallel>, #tpu.dimension_semantics<parallel>], iteration_bounds = array<i64: 1, 1>, scalar_prefetch = 0 : i64, scratch_operands = 0 : i64, tpu.core_type = #tpu.core_type<tc>, window_params = [{transform_indices = @transform_0, window_bounds = array<i64: 2, 4, 2, 128>}, {transform_indices = @transform_1, window_bounds = array<i64: 2, 4, 2, 128>}, {transform_indices = @transform_2, window_bounds = array<i64: 1, 1, 2, 128>}, {transform_indices = @transform_3, window_bounds = array<i64: 1, 1, 2, 128>}]} {
    %c0 = arith.constant 0 : index
    %c0_0 = arith.constant 0 : index
    %c0_1 = arith.constant 0 : index
    %c0_2 = arith.constant 0 : index
    %0 = vector.load %arg2[%c0, %c0_0, %c0_1, %c0_2] : memref<2x4x2x128xf32, #tpu.memory_space<vmem>>, vector<2x4x2x128xf32>
    %c0_3 = arith.constant 0 : index
    %c0_4 = arith.constant 0 : index
    %c0_5 = arith.constant 0 : index
    %c0_6 = arith.constant 0 : index
    %1 = vector.load %arg3[%c0_3, %c0_4, %c0_5, %c0_6] : memref<2x4x2x128xf32, #tpu.memory_space<vmem>>, vector<2x4x2x128xf32>
    tpu.vector_store %arg3[%c0_3, %c0_4, %c0_5, %c0_6], %0 {strides = array<i32>} : memref<2x4x2x128xf32, #tpu.memory_space<vmem>>, vector<2x4x2x128xf32>,
    %cst = arith.constant dense<0.000000e+00> : vector<2x128xf32>
    %2 = vector.multi_reduction <add>, %0, %cst [0, 1] : vector<2x4x2x128xf32> to vector<2x128xf32>
    %3 = vector.shape_cast %2 : vector<2x128xf32> to vector<1x1x2x128xf32>
    %c0_7 = arith.constant 0 : index
    %c0_8 = arith.constant 0 : index
    %c0_9 = arith.constant 0 : index
    %c0_10 = arith.constant 0 : index
    %4 = vector.load %arg4[%c0_7, %c0_8, %c0_9, %c0_10] : memref<1x1x2x128xf32, #tpu.memory_space<vmem>>, vector<1x1x2x128xf32>
    tpu.vector_store %arg4[%c0_7, %c0_8, %c0_9, %c0_10], %3 {strides = array<i32>} : memref<1x1x2x128xf32, #tpu.memory_space<vmem>>, vector<1x1x2x128xf32>,
    %5 = arith.mulf %0, %0 : vector<2x4x2x128xf32>
    %cst_11 = arith.constant dense<0.000000e+00> : vector<2x128xf32>
    %6 = vector.multi_reduction <add>, %5, %cst_11 [0, 1] : vector<2x4x2x128xf32> to vector<2x128xf32>
    %7 = vector.shape_cast %6 : vector<2x128xf32> to vector<1x1x2x128xf32>
    %c0_12 = arith.constant 0 : index
    %c0_13 = arith.constant 0 : index
    %c0_14 = arith.constant 0 : index
    %c0_15 = arith.constant 0 : index
    %8 = vector.load %arg5[%c0_12, %c0_13, %c0_14, %c0_15] : memref<1x1x2x128xf32, #tpu.memory_space<vmem>>, vector<1x1x2x128xf32>
    tpu.vector_store %arg5[%c0_12, %c0_13, %c0_14, %c0_15], %7 {strides = array<i32>} : memref<1x1x2x128xf32, #tpu.memory_space<vmem>>, vector<1x1x2x128xf32>,
    return
  }
  func.func @transform_0(%arg0: i32, %arg1: i32) -> (i32, i32, i32, i32) {
    %c0_i32 = arith.constant 0 : i32
    %c0_i32_0 = arith.constant 0 : i32
    %c0_i32_1 = arith.constant 0 : i32
    return %arg0, %arg1, %c0_i32, %c0_i32_0 : i32, i32, i32, i32
  }
  func.func @transform_1(%arg0: i32, %arg1: i32) -> (i32, i32, i32, i32) {
    %c0_i32 = arith.constant 0 : i32
    %c0_i32_0 = arith.constant 0 : i32
    %c0_i32_1 = arith.constant 0 : i32
    return %arg0, %arg1, %c0_i32, %c0_i32_0 : i32, i32, i32, i32
  }
  func.func @transform_2(%arg0: i32, %arg1: i32) -> (i32, i32, i32, i32) {
    %c0_i32 = arith.constant 0 : i32
    %c0_i32_0 = arith.constant 0 : i32
    %c0_i32_1 = arith.constant 0 : i32
    return %arg0, %arg1, %c0_i32, %c0_i32_0 : i32, i32, i32, i32
  }
  func.func @transform_3(%arg0: i32, %arg1: i32) -> (i32, i32, i32, i32) {
    %c0_i32 = arith.constant 0 : i32
    %c0_i32_0 = arith.constant 0 : i32
    %c0_i32_1 = arith.constant 0 : i32
    return %arg0, %arg1, %c0_i32, %c0_i32_0 : i32, i32, i32, i32
  }
}

</mosaic_0001>

<llo_original>
// kernel: _minibatch_std.2
$region0: #{_minibatch_std.2}
  #allocation0 [shape = 'u32[]', space=smem, size = 0x4, offset = 0x4, fixed_abs, tag = 'smem constant byte address 0x4 - core index']
  #allocation1 [shape = 'u32[72,128]{1,0:T(1,128)}', space=vmem, size = 0x9000, scoped, tag = 'internal scratch']
  %s0 = inlined_call_operand.vmem [shape: f32[2,4,2,128], index: 0, kind: input, shape index: {}]
  %s1 = inlined_call_operand.vmem [shape: f32[2,5,2,128], index: 1, kind: output, shape index: {0}]
  %s2 = inlined_call_operand.vmem [shape: f32[1,1,2,128], index: 2, kind: output, shape index: {1}]
  %s3 = inlined_call_operand.vmem [shape: f32[1,1,2,128], index: 3, kind: output, shape index: {2}]
  %4 = xla_tuple %s1, %s2, %s3
  %s5 = sld [smem:[#allocation0]]
  $region67: #{_minibatch_std.2} parent=0
    _
  %s7 = ssub.s32 1, %s5
  %s8 = scalar_select 0, %s7, %s5
  $region1: #{_minibatch_std.2} parent=0
    #allocation2 [shape = 'u8[8192]{0}', space=vmem, size = 0x2000, scoped, tag = 'output window, operand 0, single buffered']
    // Predicated region
    $region2: #{_minibatch_std.2} parent=1 // pred_check
      _
    $region3: #{_minibatch_std.2} parent=1 // pred_check_branch
      %10 = sbr.rel (0) target = $region5
    $region4: #{_minibatch_std.2} parent=1 // pred_region
      _
    $region5: #{_minibatch_std.2} parent=1 // pred_fallthru
      _
    %v11 = vld [vmem:[%s0] sm:$0x3]
    %v12 = vld [vmem:[%s0 + $0x2] sm:$0x3]
    %v13 = vld [vmem:[%s0 + $0x4] sm:$0x3]
    %v14 = vld [vmem:[%s0 + $0x6] sm:$0x3]
    %v15 = vld [vmem:[%s0 + $0x8] sm:$0x3]
    %v16 = vld [vmem:[%s0 + $0xa] sm:$0x3]
    %v17 = vld [vmem:[%s0 + $0xc] sm:$0x3]
    %v18 = vld [vmem:[%s0 + $0xe] sm:$0x3]
    %19 = vst [vmem:[#allocation2] sm:$0x3] %v11
    %20 = vst [vmem:[#allocation2 + $0x2] sm:$0x3] %v12
    %21 = vst [vmem:[#allocation2 + $0x4] sm:$0x3] %v13
    %22 = vst [vmem:[#allocation2 + $0x6] sm:$0x3] %v14
    %23 = vst [vmem:[#allocation2 + $0x8] sm:$0x3] %v15
    %24 = vst [vmem:[#allocation2 + $0xa] sm:$0x3] %v16
    %25 = vst [vmem:[#allocation2 + $0xc] sm:$0x3] %v17
    %26 = vst [vmem:[#allocation2 + $0xe] sm:$0x3] %v18
    %vm27 = vcmask 1041408
    %v28 = vsel %vm27, %v11, 0.0
    %v29 = vsel %vm27, %v12, 0.0
    %v30 = vadd.f32 %v28, %v29
    %v31 = vsel %vm27, %v13, 0.0
    %v32 = vadd.f32 %v30, %v31
    %v33 = vsel %vm27, %v14, 0.0
    %v34 = vadd.f32 %v32, %v33
    %v35 = vsel %vm27, %v15, 0.0
    %v36 = vadd.f32 %v34, %v35
    %v37 = vsel %vm27, %v16, 0.0
    %v38 = vadd.f32 %v36, %v37
    %v39 = vsel %vm27, %v17, 0.0
    %v40 = vadd.f32 %v38, %v39
    %v41 = vsel %vm27, %v18, 0.0
    %v42 = vadd.f32 %v40, %v41
    %43 = vst [vmem:[%s2] sm:$0x3] %v42
    %v44 = vmul.f32 %v11, %v11
    %v45 = vmul.f32 %v12, %v12
    %v46 = vmul.f32 %v13, %v13
    %v47 = vmul.f32 %v14, %v14
    %v48 = vmul.f32 %v15, %v15
    %v49 = vmul.f32 %v16, %v16
    %v50 = vmul.f32 %v17, %v17
    %v51 = vmul.f32 %v18, %v18
    %v52 = vsel %vm27, %v44, 0.0
    %v53 = vsel %vm27, %v45, 0.0
    %v54 = vadd.f32 %v52, %v53
    %v55 = vsel %vm27, %v46, 0.0
    %v56 = vadd.f32 %v54, %v55
    %v57 = vsel %vm27, %v47, 0.0
    %v58 = vadd.f32 %v56, %v57
    %v59 = vsel %vm27, %v48, 0.0
    %v60 = vadd.f32 %v58, %v59
    %v61 = vsel %vm27, %v49, 0.0
    %v62 = vadd.f32 %v60, %v61
    %v63 = vsel %vm27, %v50, 0.0
    %v64 = vadd.f32 %v62, %v63
    %v65 = vsel %vm27, %v51, 0.0
    %v66 = vadd.f32 %v64, %v65
    %67 = vst [vmem:[%s3] sm:$0x3] %v66
    // Predicated region
    $region6: #{_minibatch_std.2} parent=1 // pred_check
      _
    $region7: #{_minibatch_std.2} parent=1 // pred_check_branch
      %69 = sbr.rel (0) target = $region9
    $region8: #{_minibatch_std.2} parent=1 // pred_region
      // Predicated region
      $region10: #{_minibatch_std.2} parent=8 // pred_check
        _
      $region11: #{_minibatch_std.2} parent=8 // pred_check_branch
        %71 = sbr.rel (0) target = $region13
      $region12: #{_minibatch_std.2} parent=8 // pred_region
        // Predicated region
        $region14: #{_minibatch_std.2} parent=12 // pred_check
          _
        $region15: #{_minibatch_std.2} parent=12 // pred_check_branch
          %73 = sbr.rel target = $region17
        $region16: #{_minibatch_std.2} parent=12 // pred_region
          // Predicated region
          $region29: #{_minibatch_std.2} parent=16 // pred_check
            _
          $region30: #{_minibatch_std.2} parent=16 // pred_check_branch
            %103 = sbr.rel (0) target = $region32
          $region31: #{_minibatch_std.2} parent=16 // pred_region
            loop: start=0, step=1, limit=1
            $region33: #{_minibatch_std.2} parent=31 // loop_pre_header
              _
            $region34: #{_minibatch_std.2} parent=31 // loop_header
              %s105 = sphi 0, %s109
              %p106 = scmp.ge.s32.totalorder %s105, 1
              %s110 = sphi [#allocation2], [#allocation2]
              %s111 = sphi %s1, %s1
            $region35: #{_minibatch_std.2} parent=31 // loop_header_branch
              %108 = sbr.rel (%p106) target = $region39
            $region36: #{_minibatch_std.2} parent=31 // loop_body
              _
            $region37: #{_minibatch_std.2} parent=31 // loop_footer
              %s109 = sadd.s32 1, %s105
            $region38: #{_minibatch_std.2} parent=31 // loop_footer_branch
              %104 = sbr.rel target = $region34
            $region39: #{_minibatch_std.2} parent=31 // loop_exit
              _
            %s113 = ssub.s32 4, 1
            loop: start=0, step=1, limit=1
            $region40: #{_minibatch_std.2} parent=31 // loop_pre_header
              _
            $region41: #{_minibatch_std.2} parent=31 // loop_header
              %s115 = sphi 0, %s119
              %p116 = scmp.ge.s32.totalorder %s115, 1
              %s120 = sphi [#allocation2], [#allocation2]
              %s121 = sphi %s1, %s1
            $region42: #{_minibatch_std.2} parent=31 // loop_header_branch
              %118 = sbr.rel (%p116) target = $region46
            $region43: #{_minibatch_std.2} parent=31 // loop_body
              %v122 = vld [vmem:[%s120] sm:%s113]
              %123 = vst [vmem:[%s121] sm:%s113] %v122
              %v124 = vld [vmem:[%s120 + $0x2] sm:%s113]
              %125 = vst [vmem:[%s121 + $0x2] sm:%s113] %v124
              %v126 = vld [vmem:[%s120 + $0x4] sm:%s113]
              %127 = vst [vmem:[%s121 + $0x4] sm:%s113] %v126
              %v128 = vld [vmem:[%s120 + $0x6] sm:%s113]
              %129 = vst [vmem:[%s121 + $0x6] sm:%s113] %v128
              %v130 = vld [vmem:[%s120 + $0x8] sm:%s113]
              %131 = vst [vmem:[%s121 + $0xa] sm:%s113] %v130
              %v132 = vld [vmem:[%s120 + $0xa] sm:%s113]
              %133 = vst [vmem:[%s121 + $0xc] sm:%s113] %v132
              %v134 = vld [vmem:[%s120 + $0xc] sm:%s113]
              %135 = vst [vmem:[%s121 + $0xe] sm:%s113] %v134
              %v136 = vld [vmem:[%s120 + $0xe] sm:%s113]
              %137 = vst [vmem:[%s121 + $0x10] sm:%s113] %v136
            $region44: #{_minibatch_std.2} parent=31 // loop_footer
              %s119 = sadd.s32 1, %s115
            $region45: #{_minibatch_std.2} parent=31 // loop_footer_branch
              %114 = sbr.rel target = $region41
            $region46: #{_minibatch_std.2} parent=31 // loop_exit
              _
          $region32: #{_minibatch_std.2} parent=16 // pred_fallthru
            _
        $region17: #{_minibatch_std.2} parent=12 // pred_fallthru
          _
        // Predicated region
        $region18: #{_minibatch_std.2} parent=12 // pred_check
          _
        $region19: #{_minibatch_std.2} parent=12 // pred_check_branch
          %75 = sbr.rel (0) target = $region21
        $region20: #{_minibatch_std.2} parent=12 // pred_region
          %s77 = ssub.s32 4, 1
          loop: start=0, step=1, limit=1
          $region22: #{_minibatch_std.2} parent=20 // loop_pre_header
            _
          $region23: #{_minibatch_std.2} parent=20 // loop_header
            %s79 = sphi 0, %s83
            %p80 = scmp.ge.s32.totalorder %s79, 1
            %s84 = sphi [#allocation2], [#allocation2]
            %s85 = sphi %s1, %s1
          $region24: #{_minibatch_std.2} parent=20 // loop_header_branch
            %82 = sbr.rel (%p80) target = $region28
          $region25: #{_minibatch_std.2} parent=20 // loop_body
            %v86 = vld [vmem:[%s84] sm:%s77]
            %87 = vst [vmem:[%s85] sm:%s77] %v86
            %v88 = vld [vmem:[%s84 + $0x2] sm:%s77]
            %89 = vst [vmem:[%s85 + $0x2] sm:%s77] %v88
            %v90 = vld [vmem:[%s84 + $0x4] sm:%s77]
            %91 = vst [vmem:[%s85 + $0x4] sm:%s77] %v90
            %v92 = vld [vmem:[%s84 + $0x6] sm:%s77]
            %93 = vst [vmem:[%s85 + $0x6] sm:%s77] %v92
            %v94 = vld [vmem:[%s84 + $0x8] sm:%s77]
            %95 = vst [vmem:[%s85 + $0xa] sm:%s77] %v94
            %v96 = vld [vmem:[%s84 + $0xa] sm:%s77]
            %97 = vst [vmem:[%s85 + $0xc] sm:%s77] %v96
            %v98 = vld [vmem:[%s84 + $0xc] sm:%s77]
            %99 = vst [vmem:[%s85 + $0xe] sm:%s77] %v98
            %v100 = vld [vmem:[%s84 + $0xe] sm:%s77]
            %101 = vst [vmem:[%s85 + $0x10] sm:%s77] %v100
          $region26: #{_minibatch_std.2} parent=20 // loop_footer
            %s83 = sadd.s32 1, %s79
          $region27: #{_minibatch_std.2} parent=20 // loop_footer_branch
            %78 = sbr.rel target = $region23
          $region28: #{_minibatch_std.2} parent=20 // loop_exit
            _
        $region21: #{_minibatch_std.2} parent=12 // pred_fallthru
          _
      $region13: #{_minibatch_std.2} parent=8 // pred_fallthru
        _
      %138 = vnop
    $region9: #{_minibatch_std.2} parent=1 // pred_fallthru
      _
    // Predicated region
    $region47: #{_minibatch_std.2} parent=1 // pred_check
      _
    $region48: #{_minibatch_std.2} parent=1 // pred_check_branch
      %140 = sbr.rel (0) target = $region50
    $region49: #{_minibatch_std.2} parent=1 // pred_region
      _
    $region50: #{_minibatch_std.2} parent=1 // pred_fallthru
      _
    // Predicated region
    $region51: #{_minibatch_std.2} parent=1 // pred_check
      _
    $region52: #{_minibatch_std.2} parent=1 // pred_check_branch
      %142 = sbr.rel (0) target = $region54
    $region53: #{_minibatch_std.2} parent=1 // pred_region
      _
    $region54: #{_minibatch_std.2} parent=1 // pred_fallthru
      _
    // Predicated region
    $region55: #{_minibatch_std.2} parent=1 // pred_check
      _
    $region56: #{_minibatch_std.2} parent=1 // pred_check_branch
      %144 = sbr.rel (0) target = $region58
    $region57: #{_minibatch_std.2} parent=1 // pred_region
      _
    $region58: #{_minibatch_std.2} parent=1 // pred_fallthru
      _
    // Predicated region
    $region59: #{_minibatch_std.2} parent=1 // pred_check
      _
    $region60: #{_minibatch_std.2} parent=1 // pred_check_branch
      %146 = sbr.rel (0) target = $region62
    $region61: #{_minibatch_std.2} parent=1 // pred_region
      _
    $region62: #{_minibatch_std.2} parent=1 // pred_fallthru
      _
    // Predicated region
    $region63: #{_minibatch_std.2} parent=1 // pred_check
      _
    $region64: #{_minibatch_std.2} parent=1 // pred_check_branch
      %148 = sbr.rel (0) target = $region66
    $region65: #{_minibatch_std.2} parent=1 // pred_region
      _
    $region66: #{_minibatch_std.2} parent=1 // pred_fallthru
      _

// kernel: _minibatch_std.3
$region0: #{_minibatch_std.3}
  #allocation0 [shape = 'u32[]', space=smem, size = 0x4, offset = 0x4, fixed_abs, tag = 'smem constant byte address 0x4 - core index']
  #allocation1 [shape = 'u32[72,128]{1,0:T(1,128)}', space=vmem, size = 0x9000, scoped, tag = 'internal scratch']
  #allocation2 [shape = 'f32[1,1]{1,0:T(1,128)S(1)}', space=vmem, size = 0x200, scoped, tag = 'scoped memory for _minibatch_std.3']
  %s0 = inlined_call_operand.<no memory space> [shape: f32[1,1], index: 0, kind: input, shape index: {}]
  %s1 = inlined_call_operand.vmem [shape: f32[2,5,2,128], index: 1, kind: input, shape index: {}, may-alias: {1,2}]
  %s2 = inlined_call_operand.vmem [shape: f32[2,5,2,128], index: 2, kind: output, shape index: {}, may-alias: {1,2}]
  %s3 = sld [smem:[#allocation0]]
  $region44: #{_minibatch_std.3} parent=0
    _
  %s5 = ssub.s32 1, %s3
  %s6 = scalar_select 0, %s5, %s3
  %v7 = vstv %s0
  %8 = vst [vmem:[#allocation2] sm:$0x1] %v7
  $region1: #{_minibatch_std.3} parent=0
    #allocation3 [shape = 'u8[2048]{0}', space=vmem, size = 0x800, scoped, tag = 'output window, operand 0, single buffered']
    // Predicated region
    $region2: #{_minibatch_std.3} parent=1 // pred_check
      _
    $region3: #{_minibatch_std.3} parent=1 // pred_check_branch
      %10 = sbr.rel (0) target = $region5
    $region4: #{_minibatch_std.3} parent=1 // pred_region
      _
    $region5: #{_minibatch_std.3} parent=1 // pred_fallthru
      _
    %v11 = vld [vmem:[#allocation2] sm:$0x1]
    %v13 = vperm.slane %v11, 0
    %14 = vset.pattern.permute.xlu0 0
    %15 = vperm.xlu0 %14, %v13
    %v16 = vpop.permute.xlu0 %15
    %18 = vst [vmem:[#allocation3] sm:$0x3] %v16
    %19 = vst [vmem:[#allocation3 + $0x2] sm:$0x3] %v16
    // Predicated region
    $region6: #{_minibatch_std.3} parent=1 // pred_check
      _
    $region7: #{_minibatch_std.3} parent=1 // pred_check_branch
      %21 = sbr.rel (0) target = $region9
    $region8: #{_minibatch_std.3} parent=1 // pred_region
      %s22 = scalar_lea.vmem %s2, 8
      // Predicated region
      $region10: #{_minibatch_std.3} parent=8 // pred_check
        _
      $region11: #{_minibatch_std.3} parent=8 // pred_check_branch
        %24 = sbr.rel (0) target = $region13
      $region12: #{_minibatch_std.3} parent=8 // pred_region
        // Predicated region
        $region14: #{_minibatch_std.3} parent=12 // pred_check
          _
        $region15: #{_minibatch_std.3} parent=12 // pred_check_branch
          %26 = sbr.rel target = $region17
        $region16: #{_minibatch_std.3} parent=12 // pred_region
          // Predicated region
          $region29: #{_minibatch_std.3} parent=16 // pred_check
            _
          $region30: #{_minibatch_std.3} parent=16 // pred_check_branch
            %44 = sbr.rel (0) target = $region32
          $region31: #{_minibatch_std.3} parent=16 // pred_region
            %s46 = ssub.s32 4, 1
            loop: start=0, step=1, limit=1
            $region33: #{_minibatch_std.3} parent=31 // loop_pre_header
              _
            $region34: #{_minibatch_std.3} parent=31 // loop_header
              %s48 = sphi 0, %s52
              %p49 = scmp.ge.s32.totalorder %s48, 1
              %s53 = sphi [#allocation3], [#allocation3]
              %s54 = sphi %s22, %s22
            $region35: #{_minibatch_std.3} parent=31 // loop_header_branch
              %51 = sbr.rel (%p49) target = $region39
            $region36: #{_minibatch_std.3} parent=31 // loop_body
              %v55 = vld [vmem:[%s53] sm:%s46]
              %56 = vst [vmem:[%s54] sm:%s46] %v55
              %v57 = vld [vmem:[%s53 + $0x2] sm:%s46]
              %58 = vst [vmem:[%s54 + $0xa] sm:%s46] %v57
            $region37: #{_minibatch_std.3} parent=31 // loop_footer
              %s52 = sadd.s32 1, %s48
            $region38: #{_minibatch_std.3} parent=31 // loop_footer_branch
              %47 = sbr.rel target = $region34
            $region39: #{_minibatch_std.3} parent=31 // loop_exit
              _
          $region32: #{_minibatch_std.3} parent=16 // pred_fallthru
            _
        $region17: #{_minibatch_std.3} parent=12 // pred_fallthru
          _
        // Predicated region
        $region18: #{_minibatch_std.3} parent=12 // pred_check
          _
        $region19: #{_minibatch_std.3} parent=12 // pred_check_branch
          %28 = sbr.rel (0) target = $region21
        $region20: #{_minibatch_std.3} parent=12 // pred_region
          %s30 = ssub.s32 4, 1
          loop: start=0, step=1, limit=1
          $region22: #{_minibatch_std.3} parent=20 // loop_pre_header
            _
          $region23: #{_minibatch_std.3} parent=20 // loop_header
            %s32 = sphi 0, %s36
            %p33 = scmp.ge.s32.totalorder %s32, 1
            %s37 = sphi [#allocation3], [#allocation3]
            %s38 = sphi %s22, %s22
          $region24: #{_minibatch_std.3} parent=20 // loop_header_branch
            %35 = sbr.rel (%p33) target = $region28
          $region25: #{_minibatch_std.3} parent=20 // loop_body
            %v39 = vld [vmem:[%s37] sm:%s30]
            %40 = vst [vmem:[%s38] sm:%s30] %v39
            %v41 = vld [vmem:[%s37 + $0x2] sm:%s30]
            %42 = vst [vmem:[%s38 + $0xa] sm:%s30] %v41
          $region26: #{_minibatch_std.3} parent=20 // loop_footer
            %s36 = sadd.s32 1, %s32
          $region27: #{_minibatch_std.3} parent=20 // loop_footer_branch
            %31 = sbr.rel target = $region23
          $region28: #{_minibatch_std.3} parent=20 // loop_exit
            _
        $region21: #{_minibatch_std.3} parent=12 // pred_fallthru
          _
      $region13: #{_minibatch_std.3} parent=8 // pred_fallthru
        _
      %59 = vnop
    $region9: #{_minibatch_std.3} parent=1 // pred_fallthru
      _
    // Predicated region
    $region40: #{_minibatch_std.3} parent=1 // pred_check
      _
    $region41: #{_minibatch_std.3} parent=1 // pred_check_branch
      %61 = sbr.rel (0) target = $region43
    $region42: #{_minibatch_std.3} parent=1 // pred_region
      _
    $region43: #{_minibatch_std.3} parent=1 // pred_fallthru
      _

</llo_original>
